<compile_context>
chip_gen: v6e
topology: v6e:2x2x1
jax: 0.10.0
libtpu: 0.0.40
codegen_flags: <defaults>
</compile_context>

<pallas_src>
import jax
import jax.numpy as jnp
from jax.experimental import pallas as pl
from jax.experimental.pallas import tpu as pltpu

_LANE = 128
_TARGET_BLOCK_BYTES = 4 * 1024 * 1024   # ~4 MiB per-input block in the big-tensor path
_VMEM_LIMIT_BYTES = 32 * 1024 * 1024    # 3 arrays x 2 buffers x 4 MiB + headroom; safe on v5e/v6e/v7x


def _add_kernel(a_ref, b_ref, o_ref):
    # Whole-tile elementwise add on the VPU; HBM DMA is the only real cost.
    o_ref[...] = a_ref[...] + b_ref[...]


def _cdiv(a, b):
    return -(-a // b)


def _round_up(a, b):
    return _cdiv(a, b) * b


def _sublane(dtype):
    # Min sublane tile: 8 for 32-bit, 16 for bf16/fp16, 32 for int8/fp8.
    itemsize = jnp.dtype(dtype).itemsize
    return max(8, 32 // max(itemsize, 1))


def _choose_lane_width(n):
    # Widest lane width (multiple of 128) dividing n; else 128 (with a jnp tail).
    for cand in (4096, 3584, 3072, 2560, 2048, 1536, 1280, 1024,
                 896, 768, 640, 512, 384, 256, 128):
        if n % cand == 0:
            return cand
    return _LANE


def _choose_block_rows(rows, sub, bytes_per_row):
    """Sublane-aligned block height giving >=2 (preferably even) grid steps,
    capped at ~4 MiB per input block."""
    if rows <= sub:
        return rows  # full-extent block; tiling constraint forbids smaller splits
    cap = max(sub, ((_TARGET_BLOCK_BYTES // bytes_per_row) // sub) * sub)
    fallback = None
    for target_steps in (4, 2):
        br = min(rows, min(cap, max(sub, _round_up(_cdiv(rows, target_steps), sub))))
        steps = _cdiv(rows, br)
        if fallback is None:
            fallback = br
        if steps % 2 == 0:
            return br
    # Capped (large-activation) case: nudge the step count to a multiple of 2
    # so both v7x TensorCores stay busy through the last step.
    br = fallback
    steps = _cdiv(rows, br)
    if steps > 1 and steps % 2 == 1:
        br2 = min(rows, max(sub, _round_up(_cdiv(rows, steps + 1), sub)))
        if _cdiv(rows, br2) % 2 == 0:
            br = br2
    return br


def pallas_add(x129, x115):
    assert x129.shape == x115.shape and x129.dtype == x115.dtype
    orig_shape = x129.shape
    n = 1
    for d in orig_shape:
        n *= d

    dtype = x129.dtype
    itemsize = jnp.dtype(dtype).itemsize
    sub = _sublane(dtype)

    L = _choose_lane_width(n)
    rows = n // L
    n_main = rows * L
    tail = n - n_main  # < 128 elements, only nonzero when n % 128 != 0

    if rows == 0:
        # Degenerate tiny input (< one lane row): not worth a kernel launch.
        return x129 + x115

    a_flat = x129.reshape(-1)
    b_flat = x115.reshape(-1)
    a2 = a_flat[:n_main].reshape(rows, L)
    b2 = b_flat[:n_main].reshape(rows, L)

    bytes_per_row = L * itemsize
    block_rows = _choose_block_rows(rows, sub, bytes_per_row)
    grid = (_cdiv(rows, block_rows),)

    out = pl.pallas_call(
        _add_kernel,
        out_shape=jax.ShapeDtypeStruct((rows, L), dtype),
        grid_spec=pltpu.PrefetchScalarGridSpec(
            num_scalar_prefetch=0,
            grid=grid,
            in_specs=[
                pl.BlockSpec((block_rows, L), lambda i: (i, 0)),
                pl.BlockSpec((block_rows, L), lambda i: (i, 0)),
            ],
            out_specs=pl.BlockSpec((block_rows, L), lambda i: (i, 0)),
        ),
        compiler_params=pltpu.CompilerParams(
            dimension_semantics=("parallel",),
            vmem_limit_bytes=_VMEM_LIMIT_BYTES,
        ),
    )(a2, b2)

    out_flat = out.reshape(-1)
    if tail:
        # Ragged tail (<128 elems): plain jnp add, no full-array pad/copy.
        tail_sum = a_flat[n_main:] + b_flat[n_main:]
        out_flat = jnp.concatenate([out_flat, tail_sum])
    return out_flat.reshape(orig_shape)


pallas_add_jit = jax.jit(pallas_add)


if __name__ == "__main__":
    # Module's forward takes two [1, 40, 56, 56] tensors (already small).
    key = jax.random.PRNGKey(0)
    k1, k2 = jax.random.split(key)
    shape = (1, 40, 56, 56)
    x129 = jax.random.normal(k1, shape, dtype=jnp.float32)
    x115 = jax.random.normal(k2, shape, dtype=jnp.float32)

    out = pallas_add_jit(x129, x115)
    jax.block_until_ready(out)

    # Correctness check against plain JAX reference.
    ref = x129 + x115
    assert out.shape == shape
    assert out.dtype == ref.dtype
    assert jnp.allclose(out, ref, atol=1e-6, rtol=1e-6)

    print("KERNEL_OK")
</pallas_src>

<mosaic_0001>
module attributes {stable_mosaic.version = 11 : i64} {
  func.func @_add_kernel(%arg0: i32, %arg1: memref<24x3584xf32, #tpu.memory_space<vmem>>, %arg2: memref<24x3584xf32, #tpu.memory_space<vmem>>, %arg3: memref<24x3584xf32, #tpu.memory_space<vmem>>) attributes {dimension_semantics = [#tpu.dimension_semantics<parallel>], iteration_bounds = array<i64: 2>, scalar_prefetch = 0 : i64, scratch_operands = 0 : i64, tpu.core_type = #tpu.core_type<tc>, window_params = [{transform_indices = @transform_0, window_bounds = array<i64: 24, 3584>}, {transform_indices = @transform_1, window_bounds = array<i64: 24, 3584>}, {transform_indices = @transform_2, window_bounds = array<i64: 24, 3584>}]} {
    %c0 = arith.constant 0 : index
    %c0_0 = arith.constant 0 : index
    %0 = vector.load %arg1[%c0, %c0_0] : memref<24x3584xf32, #tpu.memory_space<vmem>>, vector<24x3584xf32>
    %c0_1 = arith.constant 0 : index
    %c0_2 = arith.constant 0 : index
    %1 = vector.load %arg2[%c0_1, %c0_2] : memref<24x3584xf32, #tpu.memory_space<vmem>>, vector<24x3584xf32>
    %2 = arith.addf %0, %1 : vector<24x3584xf32>
    %c0_3 = arith.constant 0 : index
    %c0_4 = arith.constant 0 : index
    %3 = vector.load %arg3[%c0_3, %c0_4] : memref<24x3584xf32, #tpu.memory_space<vmem>>, vector<24x3584xf32>
    tpu.vector_store %arg3[%c0_3, %c0_4], %2 {strides = array<i32>} : memref<24x3584xf32, #tpu.memory_space<vmem>>, vector<24x3584xf32>,
    return
  }
  func.func @transform_0(%arg0: i32) -> (i32, i32) {
    %c0_i32 = arith.constant 0 : i32
    %c0_i32_0 = arith.constant 0 : i32
    return %arg0, %c0_i32 : i32, i32
  }
  func.func @transform_1(%arg0: i32) -> (i32, i32) {
    %c0_i32 = arith.constant 0 : i32
    %c0_i32_0 = arith.constant 0 : i32
    return %arg0, %c0_i32 : i32, i32
  }
  func.func @transform_2(%arg0: i32) -> (i32, i32) {
    %c0_i32 = arith.constant 0 : i32
    %c0_i32_0 = arith.constant 0 : i32
    return %arg0, %c0_i32 : i32, i32
  }
}

</mosaic_0001>

<llo_original>
// kernel: pallas_add.1
$region0: #{pallas_add.1}
  #allocation0 [shape = 'u32[]', space=smem, size = 0x4, offset = 0x4, fixed_abs, tag = 'smem constant byte address 0x4 - core index']
  #allocation1 [shape = 'u32[144,128]{1,0:T(1,128)}', space=vmem, size = 0x12000, scoped, tag = 'internal scratch']
  %s0 = inlined_call_operand.vmem [shape: f32[35,3584], index: 0, kind: input, shape index: {}]
  %s1 = inlined_call_operand.vmem [shape: f32[35,3584], index: 1, kind: input, shape index: {}]
  %s2 = inlined_call_operand.vmem [shape: f32[35,3584], index: 2, kind: output, shape index: {}]
  %s3 = sld [smem:[#allocation0]]
  $region67: #{pallas_add.1} parent=0
    _
  %s5 = ssub.s32 1, %s3
  %s6 = scalar_select 0, %s5, %s3
  $region1: #{pallas_add.1} parent=0
    #allocation2 [shape = 'u8[688128]{0}', space=vmem, size = 0xa8000, scoped, tag = 'output window, operand 0']
    loop: start=0, step=1, limit=4
    $region2: #{pallas_add.1} parent=1 // loop_pre_header
      _
    $region3: #{pallas_add.1} parent=1 // loop_header
      %s8 = sphi 0, %s12
      %p9 = scmp.ge.s32.totalorder %s8, 4
      %s18 = sphi 0, %s20
      %s21 = sphi 0, %s18
      %s22 = sphi 0, %s21
      %s38 = sphi 0, %s22
      %s44 = sphi 0, %s46
      %s47 = sphi 0, %s44
      %s48 = sphi 0, %s47
      %s64 = sphi 0, %s48
      %s70 = sphi 0, %s72
      %s73 = sphi 0, %s70
      %s74 = sphi 0, %s73
      %s90 = sphi 0, %s74
    $region4: #{pallas_add.1} parent=1 // loop_header_branch
      %11 = sbr.rel (%p9) target = $region8
    $region5: #{pallas_add.1} parent=1 // loop_body
      %s13 = ssub.s32 %s8, 1
      %s14 = ssub.s32 %s8, 2
      %s15 = sadd.s32 %s8, 1
      %s16 = ssub.s32 %s8, %s15
      %p17 = scmp.eq.s32.totalorder %s16, 0
      %s19 = sadd.s32 %s18, 1
      %s20 = scalar_select %p17, %s18, %s19
      %p23 = pneg %p17
      %p24 = scmp.eq.s32.totalorder %s8, 1
      %p25 = por %p23, %p24
      %p26 = scmp.ne.s32.totalorder %s18, %s21
      %p27 = scmp.eq.s32.totalorder %s8, 0
      %p28 = por %p26, %p27
      %p29 = scmp.ne.s32.totalorder %s18, %s21
      %p30 = scmp.eq.s32.totalorder %s13, 1
      %p31 = por %p29, %p30
      %p32 = scmp.ne.s32.totalorder %s21, %s22
      %p33 = scmp.eq.s32.totalorder %s13, 0
      %p34 = por %p32, %p33
      %p35 = scmp.ne.s32.totalorder %s21, %s22
      %p36 = scmp.eq.s32.totalorder %s14, 1
      %p37 = por %p35, %p36
      %p39 = scmp.ne.s32.totalorder %s22, %s38
      %p40 = scmp.eq.s32.totalorder %s14, 0
      %p41 = por %p39, %p40
      %s42 = ssub.s32 %s8, %s15
      %p43 = scmp.eq.s32.totalorder %s42, 0
      %s45 = sadd.s32 %s44, 1
      %s46 = scalar_select %p43, %s44, %s45
      %p49 = pneg %p43
      %p50 = scmp.eq.s32.totalorder %s8, 1
      %p51 = por %p49, %p50
      %p52 = scmp.ne.s32.totalorder %s44, %s47
      %p53 = scmp.eq.s32.totalorder %s8, 0
      %p54 = por %p52, %p53
      %p55 = scmp.ne.s32.totalorder %s44, %s47
      %p56 = scmp.eq.s32.totalorder %s13, 1
      %p57 = por %p55, %p56
      %p58 = scmp.ne.s32.totalorder %s47, %s48
      %p59 = scmp.eq.s32.totalorder %s13, 0
      %p60 = por %p58, %p59
      %p61 = scmp.ne.s32.totalorder %s47, %s48
      %p62 = scmp.eq.s32.totalorder %s14, 1
      %p63 = por %p61, %p62
      %p65 = scmp.ne.s32.totalorder %s48, %s64
      %p66 = scmp.eq.s32.totalorder %s14, 0
      %p67 = por %p65, %p66
      %s68 = ssub.s32 %s8, %s15
      %p69 = scmp.eq.s32.totalorder %s68, 0
      %s71 = sadd.s32 %s70, 1
      %s72 = scalar_select %p69, %s70, %s71
      %p75 = pneg %p69
      %p76 = scmp.eq.s32.totalorder %s8, 1
      %p77 = por %p75, %p76
      %p78 = scmp.ne.s32.totalorder %s70, %s73
      %p79 = scmp.eq.s32.totalorder %s8, 0
      %p80 = por %p78, %p79
      %p81 = scmp.ne.s32.totalorder %s70, %s73
      %p82 = scmp.eq.s32.totalorder %s13, 1
      %p83 = por %p81, %p82
      %p84 = scmp.ne.s32.totalorder %s73, %s74
      %p85 = scmp.eq.s32.totalorder %s13, 0
      %p86 = por %p84, %p85
      %p87 = scmp.ne.s32.totalorder %s73, %s74
      %p88 = scmp.eq.s32.totalorder %s14, 1
      %p89 = por %p87, %p88
      %p91 = scmp.ne.s32.totalorder %s74, %s90
      %p92 = scmp.eq.s32.totalorder %s14, 0
      %p93 = por %p91, %p92
      %p94 = scmp.le.s32.totalorder 1, %s8
      %p95 = scmp.lt.s32.totalorder %s8, 3
      %p96 = pnand %p94, %p95
      %p97 = pneg %p96
      // Predicated region
      $region9: #{pallas_add.1} parent=5 // pred_check
        _
      $region10: #{pallas_add.1} parent=5 // pred_check_branch
        %99 = sbr.rel (%p96) target = $region12
      $region11: #{pallas_add.1} parent=5 // pred_region
        %s100 = ssub.s32 %s8, 1
      $region12: #{pallas_add.1} parent=5 // pred_fallthru
        _
      %p101 = scmp.lt.s32.totalorder %s8, 2
      // Predicated region
      $region13: #{pallas_add.1} parent=5 // pred_check
        %p102 = pneg %p101
      $region14: #{pallas_add.1} parent=5 // pred_check_branch
        %104 = sbr.rel (%p102) target = $region16
      $region15: #{pallas_add.1} parent=5 // pred_region
        // Predicated region
        $region17: #{pallas_add.1} parent=15 // pred_check
          %p105 = pneg %p28
        $region18: #{pallas_add.1} parent=15 // pred_check_branch
          %107 = sbr.rel (%p105) target = $region20
        $region19: #{pallas_add.1} parent=15 // pred_region
          %s108 = smul.u32 3, %s8
          %s109 = ssub.s32 5, %s108
          %p110 = scmp.lt.s32.totalorder %s109, 3
          %s111 = scalar_select %p110, %s109, 3
          %s112 = smul.u32 128, %s111
          %s113 = smul.u32 %s112, 28
          %p114 = scmp.lt.s32.totalorder %s108, 4
          %s115 = scalar_select %p114, %s108, 4
          %s116 = smul.addr %s115, 28
          %s117 = smul.addr %s116, 8
          %s118 = scalar_lea.vmem %s0, %s117
          %s119 = smul.u32 3, %s8
          %s120 = ssub.s32 5, %s119
          %p121 = scmp.lt.s32.totalorder %s120, 3
          %s122 = scalar_select %p121, %s120, 3
          %s123 = smul.u32 128, %s122
          %s124 = smul.u32 %s123, 28
        $region20: #{pallas_add.1} parent=15 // pred_fallthru
          _
        // Predicated region
        $region21: #{pallas_add.1} parent=15 // pred_check
          %p125 = pneg %p54
        $region22: #{pallas_add.1} parent=15 // pred_check_branch
          %127 = sbr.rel (%p125) target = $region24
        $region23: #{pallas_add.1} parent=15 // pred_region
          %s128 = smul.u32 3, %s8
          %s129 = ssub.s32 5, %s128
          %p130 = scmp.lt.s32.totalorder %s129, 3
          %s131 = scalar_select %p130, %s129, 3
          %s132 = smul.u32 128, %s131
          %s133 = smul.u32 %s132, 28
          %p134 = scmp.lt.s32.totalorder %s128, 4
          %s135 = scalar_select %p134, %s128, 4
          %s136 = smul.addr %s135, 28
          %s137 = smul.addr %s136, 8
          %s138 = scalar_lea.vmem %s1, %s137
          %s139 = smul.u32 3, %s8
          %s140 = ssub.s32 5, %s139
          %p141 = scmp.lt.s32.totalorder %s140, 3
          %s142 = scalar_select %p141, %s140, 3
          %s143 = smul.u32 128, %s142
          %s144 = smul.u32 %s143, 28
        $region24: #{pallas_add.1} parent=15 // pred_fallthru
          _
      $region16: #{pallas_add.1} parent=5 // pred_fallthru
        _
      %p145 = scmp.le.s32.totalorder 1, %s8
      %p146 = scmp.lt.s32.totalorder %s8, 3
      %p147 = pnand %p145, %p146
      %p148 = pneg %p147
      // Predicated region
      $region25: #{pallas_add.1} parent=5 // pred_check
        _
      $region26: #{pallas_add.1} parent=5 // pred_check_branch
        %150 = sbr.rel (%p147) target = $region28
      $region27: #{pallas_add.1} parent=5 // pred_region
        %s151 = ssub.s32 %s8, 1
        %s152 = smul.u32 3, %s13
        %s153 = ssub.s32 5, %s152
        %p154 = scmp.lt.s32.totalorder %s153, 3
        %s155 = scalar_select %p154, %s153, 3
        %s156 = smul.u32 128, %s155
        %s157 = smul.u32 %s156, 28
        %p158 = scmp.lt.s32.totalorder %s152, 4
        %s159 = scalar_select %p158, %s152, 4
        %s160 = smul.addr %s159, 28
        %s161 = smul.addr %s160, 8
        %s162 = scalar_lea.vmem %s0, %s161
        %p163 = pneg %p34
        %p164 = pneg %p31
        %s165 = smul.u32 3, %s13
        %s166 = ssub.s32 5, %s165
        %p167 = scmp.lt.s32.totalorder %s166, 3
        %s168 = scalar_select %p167, %s166, 3
        %s169 = smul.u32 128, %s168
        %s170 = smul.u32 %s169, 28
        %p171 = scmp.lt.s32.totalorder %s165, 4
        %s172 = scalar_select %p171, %s165, 4
        %s173 = smul.addr %s172, 28
        %s174 = smul.addr %s173, 8
        %s175 = scalar_lea.vmem %s1, %s174
        %p176 = pneg %p60
        %p177 = pneg %p57
        %p178 = pneg %p86
        %p179 = pneg %p83
        %s180 = sand.u32 %s73, 1
        %s181 = sand.u32 %s73, 1
        %s182 = smul.addr %s181, 672
        %s183 = scalar_lea.vmem [#allocation2], %s182
        %s184 = smul.u32 3, %s13
        %s185 = ssub.s32 5, %s184
        %p186 = scmp.lt.s32.totalorder %s185, 3
        %s187 = scalar_select %p186, %s185, 3
        %s188 = smul.u32 128, %s187
        %s189 = smul.u32 %s188, 28
        %p190 = scmp.lt.s32.totalorder %s184, 4
        %s191 = scalar_select %p190, %s184, 4
        %s192 = smul.addr %s191, 28
        %s193 = smul.addr %s192, 8
        %s194 = scalar_lea.vmem %s0, %s193
        %s195 = smul.u32 3, %s13
        %s196 = ssub.s32 5, %s195
        %p197 = scmp.lt.s32.totalorder %s196, 3
        %s198 = scalar_select %p197, %s196, 3
        %s199 = smul.u32 128, %s198
        %s200 = smul.u32 %s199, 28
        %s201 = smul.u32 3, %s13
        %s202 = ssub.s32 5, %s201
        %p203 = scmp.lt.s32.totalorder %s202, 3
        %s204 = scalar_select %p203, %s202, 3
        %s205 = smul.u32 128, %s204
        %s206 = smul.u32 %s205, 28
        %p207 = scmp.lt.s32.totalorder %s201, 4
        %s208 = scalar_select %p207, %s201, 4
        %s209 = smul.addr %s208, 28
        %s210 = smul.addr %s209, 8
        %s211 = scalar_lea.vmem %s1, %s210
        %s212 = smul.u32 3, %s13
        %s213 = ssub.s32 5, %s212
        %p214 = scmp.lt.s32.totalorder %s213, 3
        %s215 = scalar_select %p214, %s213, 3
        %s216 = smul.u32 128, %s215
        %s217 = smul.u32 %s216, 28
        %s218 = smul.u32 3, %s13
        %s219 = ssub.s32 5, %s218
        %p220 = scmp.lt.s32.totalorder %s219, 3
        %s221 = scalar_select %p220, %s219, 3
        %s222 = smul.u32 128, %s221
        %s223 = smul.u32 %s222, 28
        %v224 = vld [vmem:[%s194] sm:$0xff]
        %v225 = vld [vmem:[%s194 + $0x8] sm:$0xff]
        %v226 = vld [vmem:[%s194 + $0x10] sm:$0xff]
        %v227 = vld [vmem:[%s194 + $0x18] sm:$0xff]
        %v228 = vld [vmem:[%s194 + $0x20] sm:$0xff]
        %v229 = vld [vmem:[%s194 + $0x28] sm:$0xff]
        %v230 = vld [vmem:[%s194 + $0x30] sm:$0xff]
        %v231 = vld [vmem:[%s194 + $0x38] sm:$0xff]
        %v232 = vld [vmem:[%s194 + $0x40] sm:$0xff]
        %v233 = vld [vmem:[%s194 + $0x48] sm:$0xff]
        %v234 = vld [vmem:[%s194 + $0x50] sm:$0xff]
        %v235 = vld [vmem:[%s194 + $0x58] sm:$0xff]
        %v236 = vld [vmem:[%s194 + $0x60] sm:$0xff]
        %v237 = vld [vmem:[%s194 + $0x68] sm:$0xff]
        %v238 = vld [vmem:[%s194 + $0x70] sm:$0xff]
        %v239 = vld [vmem:[%s194 + $0x78] sm:$0xff]
        %v240 = vld [vmem:[%s194 + $0x80] sm:$0xff]
        %v241 = vld [vmem:[%s194 + $0x88] sm:$0xff]
        %v242 = vld [vmem:[%s194 + $0x90] sm:$0xff]
        %v243 = vld [vmem:[%s194 + $0x98] sm:$0xff]
        %v244 = vld [vmem:[%s194 + $0xa0] sm:$0xff]
        %v245 = vld [vmem:[%s194 + $0xa8] sm:$0xff]
        %v246 = vld [vmem:[%s194 + $0xb0] sm:$0xff]
        %v247 = vld [vmem:[%s194 + $0xb8] sm:$0xff]
        %v248 = vld [vmem:[%s194 + $0xc0] sm:$0xff]
        %v249 = vld [vmem:[%s194 + $0xc8] sm:$0xff]
        %v250 = vld [vmem:[%s194 + $0xd0] sm:$0xff]
        %v251 = vld [vmem:[%s194 + $0xd8] sm:$0xff]
        %v252 = vld [vmem:[%s194 + $0xe0] sm:$0xff]
        %v253 = vld [vmem:[%s194 + $0xe8] sm:$0xff]
        %v254 = vld [vmem:[%s194 + $0xf0] sm:$0xff]
        %v255 = vld [vmem:[%s194 + $0xf8] sm:$0xff]
        %v256 = vld [vmem:[%s194 + $0x100] sm:$0xff]
        %v257 = vld [vmem:[%s194 + $0x108] sm:$0xff]
        %v258 = vld [vmem:[%s194 + $0x110] sm:$0xff]
        %v259 = vld [vmem:[%s194 + $0x118] sm:$0xff]
        %v260 = vld [vmem:[%s194 + $0x120] sm:$0xff]
        %v261 = vld [vmem:[%s194 + $0x128] sm:$0xff]
        %v262 = vld [vmem:[%s194 + $0x130] sm:$0xff]
        %v263 = vld [vmem:[%s194 + $0x138] sm:$0xff]
        %v264 = vld [vmem:[%s194 + $0x140] sm:$0xff]
        %v265 = vld [vmem:[%s194 + $0x148] sm:$0xff]
        %v266 = vld [vmem:[%s194 + $0x150] sm:$0xff]
        %v267 = vld [vmem:[%s194 + $0x158] sm:$0xff]
        %v268 = vld [vmem:[%s194 + $0x160] sm:$0xff]
        %v269 = vld [vmem:[%s194 + $0x168] sm:$0xff]
        %v270 = vld [vmem:[%s194 + $0x170] sm:$0xff]
        %v271 = vld [vmem:[%s194 + $0x178] sm:$0xff]
        %v272 = vld [vmem:[%s194 + $0x180] sm:$0xff]
        %v273 = vld [vmem:[%s194 + $0x188] sm:$0xff]
        %v274 = vld [vmem:[%s194 + $0x190] sm:$0xff]
        %v275 = vld [vmem:[%s194 + $0x198] sm:$0xff]
        %v276 = vld [vmem:[%s194 + $0x1a0] sm:$0xff]
        %v277 = vld [vmem:[%s194 + $0x1a8] sm:$0xff]
        %v278 = vld [vmem:[%s194 + $0x1b0] sm:$0xff]
        %v279 = vld [vmem:[%s194 + $0x1b8] sm:$0xff]
        %v280 = vld [vmem:[%s194 + $0x1c0] sm:$0xff]
        %v281 = vld [vmem:[%s194 + $0x1c8] sm:$0xff]
        %v282 = vld [vmem:[%s194 + $0x1d0] sm:$0xff]
        %v283 = vld [vmem:[%s194 + $0x1d8] sm:$0xff]
        %v284 = vld [vmem:[%s194 + $0x1e0] sm:$0xff]
        %v285 = vld [vmem:[%s194 + $0x1e8] sm:$0xff]
        %v286 = vld [vmem:[%s194 + $0x1f0] sm:$0xff]
        %v287 = vld [vmem:[%s194 + $0x1f8] sm:$0xff]
        %v288 = vld [vmem:[%s194 + $0x200] sm:$0xff]
        %v289 = vld [vmem:[%s194 + $0x208] sm:$0xff]
        %v290 = vld [vmem:[%s194 + $0x210] sm:$0xff]
        %v291 = vld [vmem:[%s194 + $0x218] sm:$0xff]
        %v292 = vld [vmem:[%s194 + $0x220] sm:$0xff]
        %v293 = vld [vmem:[%s194 + $0x228] sm:$0xff]
        %v294 = vld [vmem:[%s194 + $0x230] sm:$0xff]
        %v295 = vld [vmem:[%s194 + $0x238] sm:$0xff]
        %v296 = vld [vmem:[%s194 + $0x240] sm:$0xff]
        %v297 = vld [vmem:[%s194 + $0x248] sm:$0xff]
        %v298 = vld [vmem:[%s194 + $0x250] sm:$0xff]
        %v299 = vld [vmem:[%s194 + $0x258] sm:$0xff]
        %v300 = vld [vmem:[%s194 + $0x260] sm:$0xff]
        %v301 = vld [vmem:[%s194 + $0x268] sm:$0xff]
        %v302 = vld [vmem:[%s194 + $0x270] sm:$0xff]
        %v303 = vld [vmem:[%s194 + $0x278] sm:$0xff]
        %v304 = vld [vmem:[%s194 + $0x280] sm:$0xff]
        %v305 = vld [vmem:[%s194 + $0x288] sm:$0xff]
        %v306 = vld [vmem:[%s194 + $0x290] sm:$0xff]
        %v307 = vld [vmem:[%s194 + $0x298] sm:$0xff]
        %v308 = vld [vmem:[%s211] sm:$0xff]
        %v309 = vld [vmem:[%s211 + $0x8] sm:$0xff]
        %v310 = vld [vmem:[%s211 + $0x10] sm:$0xff]
        %v311 = vld [vmem:[%s211 + $0x18] sm:$0xff]
        %v312 = vld [vmem:[%s211 + $0x20] sm:$0xff]
        %v313 = vld [vmem:[%s211 + $0x28] sm:$0xff]
        %v314 = vld [vmem:[%s211 + $0x30] sm:$0xff]
        %v315 = vld [vmem:[%s211 + $0x38] sm:$0xff]
        %v316 = vld [vmem:[%s211 + $0x40] sm:$0xff]
        %v317 = vld [vmem:[%s211 + $0x48] sm:$0xff]
        %v318 = vld [vmem:[%s211 + $0x50] sm:$0xff]
        %v319 = vld [vmem:[%s211 + $0x58] sm:$0xff]
        %v320 = vld [vmem:[%s211 + $0x60] sm:$0xff]
        %v321 = vld [vmem:[%s211 + $0x68] sm:$0xff]
        %v322 = vld [vmem:[%s211 + $0x70] sm:$0xff]
        %v323 = vld [vmem:[%s211 + $0x78] sm:$0xff]
        %v324 = vld [vmem:[%s211 + $0x80] sm:$0xff]
        %v325 = vld [vmem:[%s211 + $0x88] sm:$0xff]
        %v326 = vld [vmem:[%s211 + $0x90] sm:$0xff]
        %v327 = vld [vmem:[%s211 + $0x98] sm:$0xff]
        %v328 = vld [vmem:[%s211 + $0xa0] sm:$0xff]
        %v329 = vld [vmem:[%s211 + $0xa8] sm:$0xff]
        %v330 = vld [vmem:[%s211 + $0xb0] sm:$0xff]
        %v331 = vld [vmem:[%s211 + $0xb8] sm:$0xff]
        %v332 = vld [vmem:[%s211 + $0xc0] sm:$0xff]
        %v333 = vld [vmem:[%s211 + $0xc8] sm:$0xff]
        %v334 = vld [vmem:[%s211 + $0xd0] sm:$0xff]
        %v335 = vld [vmem:[%s211 + $0xd8] sm:$0xff]
        %v336 = vld [vmem:[%s211 + $0xe0] sm:$0xff]
        %v337 = vld [vmem:[%s211 + $0xe8] sm:$0xff]
        %v338 = vld [vmem:[%s211 + $0xf0] sm:$0xff]
        %v339 = vld [vmem:[%s211 + $0xf8] sm:$0xff]
        %v340 = vld [vmem:[%s211 + $0x100] sm:$0xff]
        %v341 = vld [vmem:[%s211 + $0x108] sm:$0xff]
        %v342 = vld [vmem:[%s211 + $0x110] sm:$0xff]
        %v343 = vld [vmem:[%s211 + $0x118] sm:$0xff]
        %v344 = vld [vmem:[%s211 + $0x120] sm:$0xff]
        %v345 = vld [vmem:[%s211 + $0x128] sm:$0xff]
        %v346 = vld [vmem:[%s211 + $0x130] sm:$0xff]
        %v347 = vld [vmem:[%s211 + $0x138] sm:$0xff]
        %v348 = vld [vmem:[%s211 + $0x140] sm:$0xff]
        %v349 = vld [vmem:[%s211 + $0x148] sm:$0xff]
        %v350 = vld [vmem:[%s211 + $0x150] sm:$0xff]
        %v351 = vld [vmem:[%s211 + $0x158] sm:$0xff]
        %v352 = vld [vmem:[%s211 + $0x160] sm:$0xff]
        %v353 = vld [vmem:[%s211 + $0x168] sm:$0xff]
        %v354 = vld [vmem:[%s211 + $0x170] sm:$0xff]
        %v355 = vld [vmem:[%s211 + $0x178] sm:$0xff]
        %v356 = vld [vmem:[%s211 + $0x180] sm:$0xff]
        %v357 = vld [vmem:[%s211 + $0x188] sm:$0xff]
        %v358 = vld [vmem:[%s211 + $0x190] sm:$0xff]
        %v359 = vld [vmem:[%s211 + $0x198] sm:$0xff]
        %v360 = vld [vmem:[%s211 + $0x1a0] sm:$0xff]
        %v361 = vld [vmem:[%s211 + $0x1a8] sm:$0xff]
        %v362 = vld [vmem:[%s211 + $0x1b0] sm:$0xff]
        %v363 = vld [vmem:[%s211 + $0x1b8] sm:$0xff]
        %v364 = vld [vmem:[%s211 + $0x1c0] sm:$0xff]
        %v365 = vld [vmem:[%s211 + $0x1c8] sm:$0xff]
        %v366 = vld [vmem:[%s211 + $0x1d0] sm:$0xff]
        %v367 = vld [vmem:[%s211 + $0x1d8] sm:$0xff]
        %v368 = vld [vmem:[%s211 + $0x1e0] sm:$0xff]
        %v369 = vld [vmem:[%s211 + $0x1e8] sm:$0xff]
        %v370 = vld [vmem:[%s211 + $0x1f0] sm:$0xff]
        %v371 = vld [vmem:[%s211 + $0x1f8] sm:$0xff]
        %v372 = vld [vmem:[%s211 + $0x200] sm:$0xff]
        %v373 = vld [vmem:[%s211 + $0x208] sm:$0xff]
        %v374 = vld [vmem:[%s211 + $0x210] sm:$0xff]
        %v375 = vld [vmem:[%s211 + $0x218] sm:$0xff]
        %v376 = vld [vmem:[%s211 + $0x220] sm:$0xff]
        %v377 = vld [vmem:[%s211 + $0x228] sm:$0xff]
        %v378 = vld [vmem:[%s211 + $0x230] sm:$0xff]
        %v379 = vld [vmem:[%s211 + $0x238] sm:$0xff]
        %v380 = vld [vmem:[%s211 + $0x240] sm:$0xff]
        %v381 = vld [vmem:[%s211 + $0x248] sm:$0xff]
        %v382 = vld [vmem:[%s211 + $0x250] sm:$0xff]
        %v383 = vld [vmem:[%s211 + $0x258] sm:$0xff]
        %v384 = vld [vmem:[%s211 + $0x260] sm:$0xff]
        %v385 = vld [vmem:[%s211 + $0x268] sm:$0xff]
        %v386 = vld [vmem:[%s211 + $0x270] sm:$0xff]
        %v387 = vld [vmem:[%s211 + $0x278] sm:$0xff]
        %v388 = vld [vmem:[%s211 + $0x280] sm:$0xff]
        %v389 = vld [vmem:[%s211 + $0x288] sm:$0xff]
        %v390 = vld [vmem:[%s211 + $0x290] sm:$0xff]
        %v391 = vld [vmem:[%s211 + $0x298] sm:$0xff]
        %v392 = vadd.f32 %v224, %v308
        %v393 = vadd.f32 %v225, %v309
        %v394 = vadd.f32 %v226, %v310
        %v395 = vadd.f32 %v227, %v311
        %v396 = vadd.f32 %v228, %v312
        %v397 = vadd.f32 %v229, %v313
        %v398 = vadd.f32 %v230, %v314
        %v399 = vadd.f32 %v231, %v315
        %v400 = vadd.f32 %v232, %v316
        %v401 = vadd.f32 %v233, %v317
        %v402 = vadd.f32 %v234, %v318
        %v403 = vadd.f32 %v235, %v319
        %v404 = vadd.f32 %v236, %v320
        %v405 = vadd.f32 %v237, %v321
        %v406 = vadd.f32 %v238, %v322
        %v407 = vadd.f32 %v239, %v323
        %v408 = vadd.f32 %v240, %v324
        %v409 = vadd.f32 %v241, %v325
        %v410 = vadd.f32 %v242, %v326
        %v411 = vadd.f32 %v243, %v327
        %v412 = vadd.f32 %v244, %v328
        %v413 = vadd.f32 %v245, %v329
        %v414 = vadd.f32 %v246, %v330
        %v415 = vadd.f32 %v247, %v331
        %v416 = vadd.f32 %v248, %v332
        %v417 = vadd.f32 %v249, %v333
        %v418 = vadd.f32 %v250, %v334
        %v419 = vadd.f32 %v251, %v335
        %v420 = vadd.f32 %v252, %v336
        %v421 = vadd.f32 %v253, %v337
        %v422 = vadd.f32 %v254, %v338
        %v423 = vadd.f32 %v255, %v339
        %v424 = vadd.f32 %v256, %v340
        %v425 = vadd.f32 %v257, %v341
        %v426 = vadd.f32 %v258, %v342
        %v427 = vadd.f32 %v259, %v343
        %v428 = vadd.f32 %v260, %v344
        %v429 = vadd.f32 %v261, %v345
        %v430 = vadd.f32 %v262, %v346
        %v431 = vadd.f32 %v263, %v347
        %v432 = vadd.f32 %v264, %v348
        %v433 = vadd.f32 %v265, %v349
        %v434 = vadd.f32 %v266, %v350
        %v435 = vadd.f32 %v267, %v351
        %v436 = vadd.f32 %v268, %v352
        %v437 = vadd.f32 %v269, %v353
        %v438 = vadd.f32 %v270, %v354
        %v439 = vadd.f32 %v271, %v355
        %v440 = vadd.f32 %v272, %v356
        %v441 = vadd.f32 %v273, %v357
        %v442 = vadd.f32 %v274, %v358
        %v443 = vadd.f32 %v275, %v359
        %v444 = vadd.f32 %v276, %v360
        %v445 = vadd.f32 %v277, %v361
        %v446 = vadd.f32 %v278, %v362
        %v447 = vadd.f32 %v279, %v363
        %v448 = vadd.f32 %v280, %v364
        %v449 = vadd.f32 %v281, %v365
        %v450 = vadd.f32 %v282, %v366
        %v451 = vadd.f32 %v283, %v367
        %v452 = vadd.f32 %v284, %v368
        %v453 = vadd.f32 %v285, %v369
        %v454 = vadd.f32 %v286, %v370
        %v455 = vadd.f32 %v287, %v371
        %v456 = vadd.f32 %v288, %v372
        %v457 = vadd.f32 %v289, %v373
        %v458 = vadd.f32 %v290, %v374
        %v459 = vadd.f32 %v291, %v375
        %v460 = vadd.f32 %v292, %v376
        %v461 = vadd.f32 %v293, %v377
        %v462 = vadd.f32 %v294, %v378
        %v463 = vadd.f32 %v295, %v379
        %v464 = vadd.f32 %v296, %v380
        %v465 = vadd.f32 %v297, %v381
        %v466 = vadd.f32 %v298, %v382
        %v467 = vadd.f32 %v299, %v383
        %v468 = vadd.f32 %v300, %v384
        %v469 = vadd.f32 %v301, %v385
        %v470 = vadd.f32 %v302, %v386
        %v471 = vadd.f32 %v303, %v387
        %v472 = vadd.f32 %v304, %v388
        %v473 = vadd.f32 %v305, %v389
        %v474 = vadd.f32 %v306, %v390
        %v475 = vadd.f32 %v307, %v391
        %476 = vst [vmem:[%s183] sm:$0xff] %v392
        %477 = vst [vmem:[%s183 + $0x8] sm:$0xff] %v393
        %478 = vst [vmem:[%s183 + $0x10] sm:$0xff] %v394
        %479 = vst [vmem:[%s183 + $0x18] sm:$0xff] %v395
        %480 = vst [vmem:[%s183 + $0x20] sm:$0xff] %v396
        %481 = vst [vmem:[%s183 + $0x28] sm:$0xff] %v397
        %482 = vst [vmem:[%s183 + $0x30] sm:$0xff] %v398
        %483 = vst [vmem:[%s183 + $0x38] sm:$0xff] %v399
        %484 = vst [vmem:[%s183 + $0x40] sm:$0xff] %v400
        %485 = vst [vmem:[%s183 + $0x48] sm:$0xff] %v401
        %486 = vst [vmem:[%s183 + $0x50] sm:$0xff] %v402
        %487 = vst [vmem:[%s183 + $0x58] sm:$0xff] %v403
        %488 = vst [vmem:[%s183 + $0x60] sm:$0xff] %v404
        %489 = vst [vmem:[%s183 + $0x68] sm:$0xff] %v405
        %490 = vst [vmem:[%s183 + $0x70] sm:$0xff] %v406
        %491 = vst [vmem:[%s183 + $0x78] sm:$0xff] %v407
        %492 = vst [vmem:[%s183 + $0x80] sm:$0xff] %v408
        %493 = vst [vmem:[%s183 + $0x88] sm:$0xff] %v409
        %494 = vst [vmem:[%s183 + $0x90] sm:$0xff] %v410
        %495 = vst [vmem:[%s183 + $0x98] sm:$0xff] %v411
        %496 = vst [vmem:[%s183 + $0xa0] sm:$0xff] %v412
        %497 = vst [vmem:[%s183 + $0xa8] sm:$0xff] %v413
        %498 = vst [vmem:[%s183 + $0xb0] sm:$0xff] %v414
        %499 = vst [vmem:[%s183 + $0xb8] sm:$0xff] %v415
        %500 = vst [vmem:[%s183 + $0xc0] sm:$0xff] %v416
        %501 = vst [vmem:[%s183 + $0xc8] sm:$0xff] %v417
        %502 = vst [vmem:[%s183 + $0xd0] sm:$0xff] %v418
        %503 = vst [vmem:[%s183 + $0xd8] sm:$0xff] %v419
        %504 = vst [vmem:[%s183 + $0xe0] sm:$0xff] %v420
        %505 = vst [vmem:[%s183 + $0xe8] sm:$0xff] %v421
        %506 = vst [vmem:[%s183 + $0xf0] sm:$0xff] %v422
        %507 = vst [vmem:[%s183 + $0xf8] sm:$0xff] %v423
        %508 = vst [vmem:[%s183 + $0x100] sm:$0xff] %v424
        %509 = vst [vmem:[%s183 + $0x108] sm:$0xff] %v425
        %510 = vst [vmem:[%s183 + $0x110] sm:$0xff] %v426
        %511 = vst [vmem:[%s183 + $0x118] sm:$0xff] %v427
        %512 = vst [vmem:[%s183 + $0x120] sm:$0xff] %v428
        %513 = vst [vmem:[%s183 + $0x128] sm:$0xff] %v429
        %514 = vst [vmem:[%s183 + $0x130] sm:$0xff] %v430
        %515 = vst [vmem:[%s183 + $0x138] sm:$0xff] %v431
        %516 = vst [vmem:[%s183 + $0x140] sm:$0xff] %v432
        %517 = vst [vmem:[%s183 + $0x148] sm:$0xff] %v433
        %518 = vst [vmem:[%s183 + $0x150] sm:$0xff] %v434
        %519 = vst [vmem:[%s183 + $0x158] sm:$0xff] %v435
        %520 = vst [vmem:[%s183 + $0x160] sm:$0xff] %v436
        %521 = vst [vmem:[%s183 + $0x168] sm:$0xff] %v437
        %522 = vst [vmem:[%s183 + $0x170] sm:$0xff] %v438
        %523 = vst [vmem:[%s183 + $0x178] sm:$0xff] %v439
        %524 = vst [vmem:[%s183 + $0x180] sm:$0xff] %v440
        %525 = vst [vmem:[%s183 + $0x188] sm:$0xff] %v441
        %526 = vst [vmem:[%s183 + $0x190] sm:$0xff] %v442
        %527 = vst [vmem:[%s183 + $0x198] sm:$0xff] %v443
        %528 = vst [vmem:[%s183 + $0x1a0] sm:$0xff] %v444
        %529 = vst [vmem:[%s183 + $0x1a8] sm:$0xff] %v445
        %530 = vst [vmem:[%s183 + $0x1b0] sm:$0xff] %v446
        %531 = vst [vmem:[%s183 + $0x1b8] sm:$0xff] %v447
        %532 = vst [vmem:[%s183 + $0x1c0] sm:$0xff] %v448
        %533 = vst [vmem:[%s183 + $0x1c8] sm:$0xff] %v449
        %534 = vst [vmem:[%s183 + $0x1d0] sm:$0xff] %v450
        %535 = vst [vmem:[%s183 + $0x1d8] sm:$0xff] %v451
        %536 = vst [vmem:[%s183 + $0x1e0] sm:$0xff] %v452
        %537 = vst [vmem:[%s183 + $0x1e8] sm:$0xff] %v453
        %538 = vst [vmem:[%s183 + $0x1f0] sm:$0xff] %v454
        %539 = vst [vmem:[%s183 + $0x1f8] sm:$0xff] %v455
        %540 = vst [vmem:[%s183 + $0x200] sm:$0xff] %v456
        %541 = vst [vmem:[%s183 + $0x208] sm:$0xff] %v457
        %542 = vst [vmem:[%s183 + $0x210] sm:$0xff] %v458
        %543 = vst [vmem:[%s183 + $0x218] sm:$0xff] %v459
        %544 = vst [vmem:[%s183 + $0x220] sm:$0xff] %v460
        %545 = vst [vmem:[%s183 + $0x228] sm:$0xff] %v461
        %546 = vst [vmem:[%s183 + $0x230] sm:$0xff] %v462
        %547 = vst [vmem:[%s183 + $0x238] sm:$0xff] %v463
        %548 = vst [vmem:[%s183 + $0x240] sm:$0xff] %v464
        %549 = vst [vmem:[%s183 + $0x248] sm:$0xff] %v465
        %550 = vst [vmem:[%s183 + $0x250] sm:$0xff] %v466
        %551 = vst [vmem:[%s183 + $0x258] sm:$0xff] %v467
        %552 = vst [vmem:[%s183 + $0x260] sm:$0xff] %v468
        %553 = vst [vmem:[%s183 + $0x268] sm:$0xff] %v469
        %554 = vst [vmem:[%s183 + $0x270] sm:$0xff] %v470
        %555 = vst [vmem:[%s183 + $0x278] sm:$0xff] %v471
        %556 = vst [vmem:[%s183 + $0x280] sm:$0xff] %v472
        %557 = vst [vmem:[%s183 + $0x288] sm:$0xff] %v473
        %558 = vst [vmem:[%s183 + $0x290] sm:$0xff] %v474
        %559 = vst [vmem:[%s183 + $0x298] sm:$0xff] %v475
        %s560 = sand.u32 %s73, 1
        %s561 = sand.u32 %s73, 1
        %s562 = smul.addr %s561, 672
        %s563 = scalar_lea.vmem [#allocation2], %s562
        // Predicated region
        $region29: #{pallas_add.1} parent=27 // pred_check
          %p564 = pneg %p83
        $region30: #{pallas_add.1} parent=27 // pred_check_branch
          %566 = sbr.rel (%p564) target = $region32
        $region31: #{pallas_add.1} parent=27 // pred_region
          %s567 = smul.u32 3, %s13
          %s568 = ssub.s32 5, %s567
          %p569 = scmp.lt.s32.totalorder %s568, 3
          %s570 = scalar_select %p569, %s568, 3
          %s571 = smul.u32 128, %s570
          %s572 = smul.u32 %s571, 28
          %p573 = scmp.ne.s32.totalorder 0, %s572
          %s574 = smul.addr %s567, 28
          %s575 = smul.addr %s574, 8
          %s576 = scalar_lea.vmem %s2, %s575
          // Predicated region
          $region33: #{pallas_add.1} parent=31 // pred_check
            %p577 = pneg %p573
          $region34: #{pallas_add.1} parent=31 // pred_check_branch
            %579 = sbr.rel (%p577) target = $region36
          $region35: #{pallas_add.1} parent=31 // pred_region
            // Predicated region
            $region37: #{pallas_add.1} parent=35 // pred_check
              _
            $region38: #{pallas_add.1} parent=35 // pred_check_branch
              %581 = sbr.rel (0) target = $region40
            $region39: #{pallas_add.1} parent=35 // pred_region
              %s582 = sdiv.u32.pop %s570, 3
              %s583 = srem.u32.pop %s570, 3
              // While loop
              $region41: #{pallas_add.1} parent=39 // loop_pre_header
                _
              $region42: #{pallas_add.1} parent=39 // loop_header
                %s585 = sphi 0, %s587
                %p586 = scmp.ge.s32.totalorder %s585, %s582
                %s590 = sphi 0, %s763
                %s591 = sphi %s563, %s766
                %s592 = sphi %s576, %s767
              $region43: #{pallas_add.1} parent=39 // loop_header_branch
                %589 = sbr.rel (%p586) target = $region47
              $region44: #{pallas_add.1} parent=39 // loop_body
                %v593 = vld [vmem:[%s591] sm:$0xff]
                %594 = vst [vmem:[%s592] sm:$0xff] %v593
                %v595 = vld [vmem:[%s591 + $0xe0] sm:$0xff]
                %596 = vst [vmem:[%s592 + $0xe0] sm:$0xff] %v595
                %v597 = vld [vmem:[%s591 + $0x1c0] sm:$0xff]
                %598 = vst [vmem:[%s592 + $0x1c0] sm:$0xff] %v597
                %v599 = vld [vmem:[%s591 + $0x8] sm:$0xff]
                %600 = vst [vmem:[%s592 + $0x8] sm:$0xff] %v599
                %v601 = vld [vmem:[%s591 + $0xe8] sm:$0xff]
                %602 = vst [vmem:[%s592 + $0xe8] sm:$0xff] %v601
                %v603 = vld [vmem:[%s591 + $0x1c8] sm:$0xff]
                %604 = vst [vmem:[%s592 + $0x1c8] sm:$0xff] %v603
                %v605 = vld [vmem:[%s591 + $0x10] sm:$0xff]
                %606 = vst [vmem:[%s592 + $0x10] sm:$0xff] %v605
                %v607 = vld [vmem:[%s591 + $0xf0] sm:$0xff]
                %608 = vst [vmem:[%s592 + $0xf0] sm:$0xff] %v607
                %v609 = vld [vmem:[%s591 + $0x1d0] sm:$0xff]
                %610 = vst [vmem:[%s592 + $0x1d0] sm:$0xff] %v609
                %v611 = vld [vmem:[%s591 + $0x18] sm:$0xff]
                %612 = vst [vmem:[%s592 + $0x18] sm:$0xff] %v611
                %v613 = vld [vmem:[%s591 + $0xf8] sm:$0xff]
                %614 = vst [vmem:[%s592 + $0xf8] sm:$0xff] %v613
                %v615 = vld [vmem:[%s591 + $0x1d8] sm:$0xff]
                %616 = vst [vmem:[%s592 + $0x1d8] sm:$0xff] %v615
                %v617 = vld [vmem:[%s591 + $0x20] sm:$0xff]
                %618 = vst [vmem:[%s592 + $0x20] sm:$0xff] %v617
                %v619 = vld [vmem:[%s591 + $0x100] sm:$0xff]
                %620 = vst [vmem:[%s592 + $0x100] sm:$0xff] %v619
                %v621 = vld [vmem:[%s591 + $0x1e0] sm:$0xff]
                %622 = vst [vmem:[%s592 + $0x1e0] sm:$0xff] %v621
                %v623 = vld [vmem:[%s591 + $0x28] sm:$0xff]
                %624 = vst [vmem:[%s592 + $0x28] sm:$0xff] %v623
                %v625 = vld [vmem:[%s591 + $0x108] sm:$0xff]
                %626 = vst [vmem:[%s592 + $0x108] sm:$0xff] %v625
                %v627 = vld [vmem:[%s591 + $0x1e8] sm:$0xff]
                %628 = vst [vmem:[%s592 + $0x1e8] sm:$0xff] %v627
                %v629 = vld [vmem:[%s591 + $0x30] sm:$0xff]
                %630 = vst [vmem:[%s592 + $0x30] sm:$0xff] %v629
                %v631 = vld [vmem:[%s591 + $0x110] sm:$0xff]
                %632 = vst [vmem:[%s592 + $0x110] sm:$0xff] %v631
                %v633 = vld [vmem:[%s591 + $0x1f0] sm:$0xff]
                %634 = vst [vmem:[%s592 + $0x1f0] sm:$0xff] %v633
                %v635 = vld [vmem:[%s591 + $0x38] sm:$0xff]
                %636 = vst [vmem:[%s592 + $0x38] sm:$0xff] %v635
                %v637 = vld [vmem:[%s591 + $0x118] sm:$0xff]
                %638 = vst [vmem:[%s592 + $0x118] sm:$0xff] %v637
                %v639 = vld [vmem:[%s591 + $0x1f8] sm:$0xff]
                %640 = vst [vmem:[%s592 + $0x1f8] sm:$0xff] %v639
                %v641 = vld [vmem:[%s591 + $0x40] sm:$0xff]
                %642 = vst [vmem:[%s592 + $0x40] sm:$0xff] %v641
                %v643 = vld [vmem:[%s591 + $0x120] sm:$0xff]
                %644 = vst [vmem:[%s592 + $0x120] sm:$0xff] %v643
                %v645 = vld [vmem:[%s591 + $0x200] sm:$0xff]
                %646 = vst [vmem:[%s592 + $0x200] sm:$0xff] %v645
                %v647 = vld [vmem:[%s591 + $0x48] sm:$0xff]
                %648 = vst [vmem:[%s592 + $0x48] sm:$0xff] %v647
                %v649 = vld [vmem:[%s591 + $0x128] sm:$0xff]
                %650 = vst [vmem:[%s592 + $0x128] sm:$0xff] %v649
                %v651 = vld [vmem:[%s591 + $0x208] sm:$0xff]
                %652 = vst [vmem:[%s592 + $0x208] sm:$0xff] %v651
                %v653 = vld [vmem:[%s591 + $0x50] sm:$0xff]
                %654 = vst [vmem:[%s592 + $0x50] sm:$0xff] %v653
                %v655 = vld [vmem:[%s591 + $0x130] sm:$0xff]
                %656 = vst [vmem:[%s592 + $0x130] sm:$0xff] %v655
                %v657 = vld [vmem:[%s591 + $0x210] sm:$0xff]
                %658 = vst [vmem:[%s592 + $0x210] sm:$0xff] %v657
                %v659 = vld [vmem:[%s591 + $0x58] sm:$0xff]
                %660 = vst [vmem:[%s592 + $0x58] sm:$0xff] %v659
                %v661 = vld [vmem:[%s591 + $0x138] sm:$0xff]
                %662 = vst [vmem:[%s592 + $0x138] sm:$0xff] %v661
                %v663 = vld [vmem:[%s591 + $0x218] sm:$0xff]
                %664 = vst [vmem:[%s592 + $0x218] sm:$0xff] %v663
                %v665 = vld [vmem:[%s591 + $0x60] sm:$0xff]
                %666 = vst [vmem:[%s592 + $0x60] sm:$0xff] %v665
                %v667 = vld [vmem:[%s591 + $0x140] sm:$0xff]
                %668 = vst [vmem:[%s592 + $0x140] sm:$0xff] %v667
                %v669 = vld [vmem:[%s591 + $0x220] sm:$0xff]
                %670 = vst [vmem:[%s592 + $0x220] sm:$0xff] %v669
                %v671 = vld [vmem:[%s591 + $0x68] sm:$0xff]
                %672 = vst [vmem:[%s592 + $0x68] sm:$0xff] %v671
                %v673 = vld [vmem:[%s591 + $0x148] sm:$0xff]
                %674 = vst [vmem:[%s592 + $0x148] sm:$0xff] %v673
                %v675 = vld [vmem:[%s591 + $0x228] sm:$0xff]
                %676 = vst [vmem:[%s592 + $0x228] sm:$0xff] %v675
                %v677 = vld [vmem:[%s591 + $0x70] sm:$0xff]
                %678 = vst [vmem:[%s592 + $0x70] sm:$0xff] %v677
                %v679 = vld [vmem:[%s591 + $0x150] sm:$0xff]
                %680 = vst [vmem:[%s592 + $0x150] sm:$0xff] %v679
                %v681 = vld [vmem:[%s591 + $0x230] sm:$0xff]
                %682 = vst [vmem:[%s592 + $0x230] sm:$0xff] %v681
                %v683 = vld [vmem:[%s591 + $0x78] sm:$0xff]
                %684 = vst [vmem:[%s592 + $0x78] sm:$0xff] %v683
                %v685 = vld [vmem:[%s591 + $0x158] sm:$0xff]
                %686 = vst [vmem:[%s592 + $0x158] sm:$0xff] %v685
                %v687 = vld [vmem:[%s591 + $0x238] sm:$0xff]
                %688 = vst [vmem:[%s592 + $0x238] sm:$0xff] %v687
                %v689 = vld [vmem:[%s591 + $0x80] sm:$0xff]
                %690 = vst [vmem:[%s592 + $0x80] sm:$0xff] %v689
                %v691 = vld [vmem:[%s591 + $0x160] sm:$0xff]
                %692 = vst [vmem:[%s592 + $0x160] sm:$0xff] %v691
                %v693 = vld [vmem:[%s591 + $0x240] sm:$0xff]
                %694 = vst [vmem:[%s592 + $0x240] sm:$0xff] %v693
                %v695 = vld [vmem:[%s591 + $0x88] sm:$0xff]
                %696 = vst [vmem:[%s592 + $0x88] sm:$0xff] %v695
                %v697 = vld [vmem:[%s591 + $0x168] sm:$0xff]
                %698 = vst [vmem:[%s592 + $0x168] sm:$0xff] %v697
                %v699 = vld [vmem:[%s591 + $0x248] sm:$0xff]
                %700 = vst [vmem:[%s592 + $0x248] sm:$0xff] %v699
                %v701 = vld [vmem:[%s591 + $0x90] sm:$0xff]
                %702 = vst [vmem:[%s592 + $0x90] sm:$0xff] %v701
                %v703 = vld [vmem:[%s591 + $0x170] sm:$0xff]
                %704 = vst [vmem:[%s592 + $0x170] sm:$0xff] %v703
                %v705 = vld [vmem:[%s591 + $0x250] sm:$0xff]
                %706 = vst [vmem:[%s592 + $0x250] sm:$0xff] %v705
                %v707 = vld [vmem:[%s591 + $0x98] sm:$0xff]
                %708 = vst [vmem:[%s592 + $0x98] sm:$0xff] %v707
                %v709 = vld [vmem:[%s591 + $0x178] sm:$0xff]
                %710 = vst [vmem:[%s592 + $0x178] sm:$0xff] %v709
                %v711 = vld [vmem:[%s591 + $0x258] sm:$0xff]
                %712 = vst [vmem:[%s592 + $0x258] sm:$0xff] %v711
                %v713 = vld [vmem:[%s591 + $0xa0] sm:$0xff]
                %714 = vst [vmem:[%s592 + $0xa0] sm:$0xff] %v713
                %v715 = vld [vmem:[%s591 + $0x180] sm:$0xff]
                %716 = vst [vmem:[%s592 + $0x180] sm:$0xff] %v715
                %v717 = vld [vmem:[%s591 + $0x260] sm:$0xff]
                %718 = vst [vmem:[%s592 + $0x260] sm:$0xff] %v717
                %v719 = vld [vmem:[%s591 + $0xa8] sm:$0xff]
                %720 = vst [vmem:[%s592 + $0xa8] sm:$0xff] %v719
                %v721 = vld [vmem:[%s591 + $0x188] sm:$0xff]
                %722 = vst [vmem:[%s592 + $0x188] sm:$0xff] %v721
                %v723 = vld [vmem:[%s591 + $0x268] sm:$0xff]
                %724 = vst [vmem:[%s592 + $0x268] sm:$0xff] %v723
                %v725 = vld [vmem:[%s591 + $0xb0] sm:$0xff]
                %726 = vst [vmem:[%s592 + $0xb0] sm:$0xff] %v725
                %v727 = vld [vmem:[%s591 + $0x190] sm:$0xff]
                %728 = vst [vmem:[%s592 + $0x190] sm:$0xff] %v727
                %v729 = vld [vmem:[%s591 + $0x270] sm:$0xff]
                %730 = vst [vmem:[%s592 + $0x270] sm:$0xff] %v729
                %v731 = vld [vmem:[%s591 + $0xb8] sm:$0xff]
                %732 = vst [vmem:[%s592 + $0xb8] sm:$0xff] %v731
                %v733 = vld [vmem:[%s591 + $0x198] sm:$0xff]
                %734 = vst [vmem:[%s592 + $0x198] sm:$0xff] %v733
                %v735 = vld [vmem:[%s591 + $0x278] sm:$0xff]
                %736 = vst [vmem:[%s592 + $0x278] sm:$0xff] %v735
                %v737 = vld [vmem:[%s591 + $0xc0] sm:$0xff]
                %738 = vst [vmem:[%s592 + $0xc0] sm:$0xff] %v737
                %v739 = vld [vmem:[%s591 + $0x1a0] sm:$0xff]
                %740 = vst [vmem:[%s592 + $0x1a0] sm:$0xff] %v739
                %v741 = vld [vmem:[%s591 + $0x280] sm:$0xff]
                %742 = vst [vmem:[%s592 + $0x280] sm:$0xff] %v741
                %v743 = vld [vmem:[%s591 + $0xc8] sm:$0xff]
                %744 = vst [vmem:[%s592 + $0xc8] sm:$0xff] %v743
                %v745 = vld [vmem:[%s591 + $0x1a8] sm:$0xff]
                %746 = vst [vmem:[%s592 + $0x1a8] sm:$0xff] %v745
                %v747 = vld [vmem:[%s591 + $0x288] sm:$0xff]
                %748 = vst [vmem:[%s592 + $0x288] sm:$0xff] %v747
                %v749 = vld [vmem:[%s591 + $0xd0] sm:$0xff]
                %750 = vst [vmem:[%s592 + $0xd0] sm:$0xff] %v749
                %v751 = vld [vmem:[%s591 + $0x1b0] sm:$0xff]
                %752 = vst [vmem:[%s592 + $0x1b0] sm:$0xff] %v751
                %v753 = vld [vmem:[%s591 + $0x290] sm:$0xff]
                %754 = vst [vmem:[%s592 + $0x290] sm:$0xff] %v753
                %v755 = vld [vmem:[%s591 + $0xd8] sm:$0xff]
                %756 = vst [vmem:[%s592 + $0xd8] sm:$0xff] %v755
                %v757 = vld [vmem:[%s591 + $0x1b8] sm:$0xff]
                %758 = vst [vmem:[%s592 + $0x1b8] sm:$0xff] %v757
                %v759 = vld [vmem:[%s591 + $0x298] sm:$0xff]
                %760 = vst [vmem:[%s592 + $0x298] sm:$0xff] %v759
                %s761 = sadd.s32 1, %s590
                %p762 = scmp.ge.s32.totalorder %s761, %s582
                %s763 = scalar_select %p762, 0, %s761
                %s764 = smul.u32 %s763, 672
                %s765 = smul.u32 %s763, 672
                %s766 = scalar_lea.vmem %s563, %s764 [#allocation2]
                %s767 = scalar_lea.vmem %s576, %s765
              $region45: #{pallas_add.1} parent=39 // loop_footer
                %s587 = sadd.s32 %s585, 1
              $region46: #{pallas_add.1} parent=39 // loop_footer_branch
                %584 = sbr.rel target = $region42
              $region47: #{pallas_add.1} parent=39 // loop_exit
                _
              %s768 = sdiv.u32.pop %s570, 3
              %s769 = srem.u32.pop %s570, 3
              %s770 = smul.u32 %s768, 3
              %s771 = smul.u32 224, %s770
              %s772 = scalar_lea.vmem %s563, %s771 [#allocation2]
              %s773 = smul.u32 224, %s770
              %s774 = scalar_lea.vmem %s576, %s773
              // While loop
              $region48: #{pallas_add.1} parent=39 // loop_pre_header
                _
              $region49: #{pallas_add.1} parent=39 // loop_header
                %s776 = sphi 0, %s778
                %p777 = scmp.ge.s32.totalorder %s776, %s769
                %s781 = sphi 0, %s842
                %s782 = sphi %s772, %s845
                %s783 = sphi %s774, %s846
              $region50: #{pallas_add.1} parent=39 // loop_header_branch
                %780 = sbr.rel (%p777) target = $region54
              $region51: #{pallas_add.1} parent=39 // loop_body
                %v784 = vld [vmem:[%s782] sm:$0xff]
                %785 = vst [vmem:[%s783] sm:$0xff] %v784
                %v786 = vld [vmem:[%s782 + $0x8] sm:$0xff]
                %787 = vst [vmem:[%s783 + $0x8] sm:$0xff] %v786
                %v788 = vld [vmem:[%s782 + $0x10] sm:$0xff]
                %789 = vst [vmem:[%s783 + $0x10] sm:$0xff] %v788
                %v790 = vld [vmem:[%s782 + $0x18] sm:$0xff]
                %791 = vst [vmem:[%s783 + $0x18] sm:$0xff] %v790
                %v792 = vld [vmem:[%s782 + $0x20] sm:$0xff]
                %793 = vst [vmem:[%s783 + $0x20] sm:$0xff] %v792
                %v794 = vld [vmem:[%s782 + $0x28] sm:$0xff]
                %795 = vst [vmem:[%s783 + $0x28] sm:$0xff] %v794
                %v796 = vld [vmem:[%s782 + $0x30] sm:$0xff]
                %797 = vst [vmem:[%s783 + $0x30] sm:$0xff] %v796
                %v798 = vld [vmem:[%s782 + $0x38] sm:$0xff]
                %799 = vst [vmem:[%s783 + $0x38] sm:$0xff] %v798
                %v800 = vld [vmem:[%s782 + $0x40] sm:$0xff]
                %801 = vst [vmem:[%s783 + $0x40] sm:$0xff] %v800
                %v802 = vld [vmem:[%s782 + $0x48] sm:$0xff]
                %803 = vst [vmem:[%s783 + $0x48] sm:$0xff] %v802
                %v804 = vld [vmem:[%s782 + $0x50] sm:$0xff]
                %805 = vst [vmem:[%s783 + $0x50] sm:$0xff] %v804
                %v806 = vld [vmem:[%s782 + $0x58] sm:$0xff]
                %807 = vst [vmem:[%s783 + $0x58] sm:$0xff] %v806
                %v808 = vld [vmem:[%s782 + $0x60] sm:$0xff]
                %809 = vst [vmem:[%s783 + $0x60] sm:$0xff] %v808
                %v810 = vld [vmem:[%s782 + $0x68] sm:$0xff]
                %811 = vst [vmem:[%s783 + $0x68] sm:$0xff] %v810
                %v812 = vld [vmem:[%s782 + $0x70] sm:$0xff]
                %813 = vst [vmem:[%s783 + $0x70] sm:$0xff] %v812
                %v814 = vld [vmem:[%s782 + $0x78] sm:$0xff]
                %815 = vst [vmem:[%s783 + $0x78] sm:$0xff] %v814
                %v816 = vld [vmem:[%s782 + $0x80] sm:$0xff]
                %817 = vst [vmem:[%s783 + $0x80] sm:$0xff] %v816
                %v818 = vld [vmem:[%s782 + $0x88] sm:$0xff]
                %819 = vst [vmem:[%s783 + $0x88] sm:$0xff] %v818
                %v820 = vld [vmem:[%s782 + $0x90] sm:$0xff]
                %821 = vst [vmem:[%s783 + $0x90] sm:$0xff] %v820
                %v822 = vld [vmem:[%s782 + $0x98] sm:$0xff]
                %823 = vst [vmem:[%s783 + $0x98] sm:$0xff] %v822
                %v824 = vld [vmem:[%s782 + $0xa0] sm:$0xff]
                %825 = vst [vmem:[%s783 + $0xa0] sm:$0xff] %v824
                %v826 = vld [vmem:[%s782 + $0xa8] sm:$0xff]
                %827 = vst [vmem:[%s783 + $0xa8] sm:$0xff] %v826
                %v828 = vld [vmem:[%s782 + $0xb0] sm:$0xff]
                %829 = vst [vmem:[%s783 + $0xb0] sm:$0xff] %v828
                %v830 = vld [vmem:[%s782 + $0xb8] sm:$0xff]
                %831 = vst [vmem:[%s783 + $0xb8] sm:$0xff] %v830
                %v832 = vld [vmem:[%s782 + $0xc0] sm:$0xff]
                %833 = vst [vmem:[%s783 + $0xc0] sm:$0xff] %v832
                %v834 = vld [vmem:[%s782 + $0xc8] sm:$0xff]
                %835 = vst [vmem:[%s783 + $0xc8] sm:$0xff] %v834
                %v836 = vld [vmem:[%s782 + $0xd0] sm:$0xff]
                %837 = vst [vmem:[%s783 + $0xd0] sm:$0xff] %v836
                %v838 = vld [vmem:[%s782 + $0xd8] sm:$0xff]
                %839 = vst [vmem:[%s783 + $0xd8] sm:$0xff] %v838
                %s840 = sadd.s32 1, %s781
                %p841 = scmp.ge.s32.totalorder %s840, %s769
                %s842 = scalar_select %p841, 0, %s840
                %s843 = smul.u32 %s842, 224
                %s844 = smul.u32 %s842, 224
                %s845 = scalar_lea.vmem %s772, %s843 [#allocation2]
                %s846 = scalar_lea.vmem %s774, %s844
              $region52: #{pallas_add.1} parent=39 // loop_footer
                %s778 = sadd.s32 %s776, 1
              $region53: #{pallas_add.1} parent=39 // loop_footer_branch
                %775 = sbr.rel target = $region49
              $region54: #{pallas_add.1} parent=39 // loop_exit
                _
            $region40: #{pallas_add.1} parent=35 // pred_fallthru
              _
            // Predicated region
            $region55: #{pallas_add.1} parent=35 // pred_check
              _
            $region56: #{pallas_add.1} parent=35 // pred_check_branch
              %848 = sbr.rel target = $region58
            $region57: #{pallas_add.1} parent=35 // pred_region
              _
            $region58: #{pallas_add.1} parent=35 // pred_fallthru
              _
          $region36: #{pallas_add.1} parent=31 // pred_fallthru
            _
          %849 = vnop
        $region32: #{pallas_add.1} parent=27 // pred_fallthru
          _
      $region28: #{pallas_add.1} parent=5 // pred_fallthru
        _
      %p850 = scmp.le.s32.totalorder 2, %s8
      // Predicated region
      $region59: #{pallas_add.1} parent=5 // pred_check
        %p851 = pneg %p850
      $region60: #{pallas_add.1} parent=5 // pred_check_branch
        %853 = sbr.rel (%p851) target = $region62
      $region61: #{pallas_add.1} parent=5 // pred_region
        %s854 = ssub.s32 %s8, 2
        // Predicated region
        $region63: #{pallas_add.1} parent=61 // pred_check
          %p855 = pneg %p89
        $region64: #{pallas_add.1} parent=61 // pred_check_branch
          %857 = sbr.rel (%p855) target = $region66
        $region65: #{pallas_add.1} parent=61 // pred_region
          %s858 = sand.u32 %s74, 1
          %s859 = sand.u32 %s74, 1
          %s860 = smul.addr %s859, 672
          %s861 = scalar_lea.vmem [#allocation2], %s860
        $region66: #{pallas_add.1} parent=61 // pred_fallthru
          _
      $region62: #{pallas_add.1} parent=5 // pred_fallthru
        _
    $region6: #{pallas_add.1} parent=1 // loop_footer
      %s12 = sadd.s32 1, %s8
    $region7: #{pallas_add.1} parent=1 // loop_footer_branch
      %7 = sbr.rel target = $region3
    $region8: #{pallas_add.1} parent=1 // loop_exit
      _

</llo_original>
